<compile_context>
chip_gen: v7x
topology: tpu7x:2x2x1
jax: 0.10.0
libtpu: 0.0.40
codegen_flags: <defaults>
</compile_context>

<pallas_src>
import functools

import jax
import jax.numpy as jnp
from jax import lax
from jax.experimental import pallas as pl
from jax.experimental.pallas import tpu as pltpu

SMOOTH = 1.0          # standard dice smoothing term
LANES = 128
SUBLANES = 8


def _dice_kernel(t_ref, p_ref, inter_ref, denom_ref, *, tm, rows_valid):
    """Accumulate per-lane partial sums of t*p and t+p into resident outputs."""
    j = pl.program_id(1)

    @pl.when(j == 0)
    def _():
        inter_ref[...] = jnp.zeros_like(inter_ref)
        denom_ref[...] = jnp.zeros_like(denom_ref)

    t = t_ref[0].astype(jnp.float32)   # (tm, 128), cast on load (inputs native dtype)
    p = p_ref[0].astype(jnp.float32)

    prod = t * p
    both = t + p

    if rows_valid % tm != 0:
        # Partial last tile: rows past `rows_valid` hold unspecified padding.
        row = j * tm + lax.broadcasted_iota(jnp.int32, (tm, LANES), 0)
        valid = row < rows_valid
        prod = jnp.where(valid, prod, 0.0)
        both = jnp.where(valid, both, 0.0)

    # Per-lane accumulation: keep the steady state on the VPU (elementwise
    # vreg adds, hidden under the DMA roofline); no per-step XLU reduce.
    inter_ref[0] = inter_ref[0] + jnp.sum(prod.reshape(-1, SUBLANES, LANES), axis=0)
    denom_ref[0] = denom_ref[0] + jnp.sum(both.reshape(-1, SUBLANES, LANES), axis=0)


def _round_up(x, m):
    return -(-x // m) * m


def _pick_tiling(rows):
    """Choose (num_splits, rows_per_split, tm, steps) for this chip."""
    try:
        kind = jax.devices()[0].device_kind.lower()
    except Exception:  # pragma: no cover - defensive
        kind = ""
    if ("v6" in kind) or ("v7" in kind):
        tm_max = 8192      # 4 MiB/input/step (f32); fits 32 MiB scoped VMEM w/ double buffering
    else:
        tm_max = 4096      # v5e: 16 MiB scoped VMEM default -> cap at 2 MiB/input/step

    # 2-way row split only where there are two TensorCores (v7x).
    num_splits = 2 if ("v7" in kind and rows % 2 == 0 and rows >= 2 * SUBLANES) else 1
    rows_per_split = rows // num_splits

    tm = min(tm_max, _round_up(rows_per_split, 2 * SUBLANES))  # mult. of 16 (bf16 packing)
    steps = -(-rows_per_split // tm)
    return num_splits, rows_per_split, tm, steps


def dice_loss_pallas(targets: jax.Array, preds: jax.Array) -> jax.Array:
    """Compute soft Dice loss over all elements. Returns a scalar f32."""
    assert targets.shape == preds.shape
    n = targets.size

    t_flat = targets.reshape(-1)
    p_flat = preds.reshape(-1)

    # Rare ragged case (element count not a multiple of 128): sum the tiny
    # (<128 element) tail with plain jnp ops; run the kernel on the aligned
    # prefix.  No full-array pad copy in any case.
    n_main = (n // LANES) * LANES
    tail_inter = jnp.float32(0.0)
    tail_denom = jnp.float32(0.0)
    if n_main != n:
        t_tail = t_flat[n_main:].astype(jnp.float32)
        p_tail = p_flat[n_main:].astype(jnp.float32)
        tail_inter = jnp.sum(t_tail * p_tail)
        tail_denom = jnp.sum(t_tail) + jnp.sum(p_tail)
        t_flat = t_flat[:n_main]
        p_flat = p_flat[:n_main]

    if n_main == 0:
        inter = tail_inter
        denom = tail_denom
    else:
        rows = n_main // LANES
        num_splits, rows_per_split, tm, steps = _pick_tiling(rows)

        t3d = t_flat.reshape(num_splits, rows_per_split, LANES)
        p3d = p_flat.reshape(num_splits, rows_per_split, LANES)

        kernel = functools.partial(_dice_kernel, tm=tm, rows_valid=rows_per_split)

        inter_out, denom_out = pl.pallas_call(
            kernel,
            out_shape=(
                jax.ShapeDtypeStruct((num_splits, SUBLANES, LANES), jnp.float32),
                jax.ShapeDtypeStruct((num_splits, SUBLANES, LANES), jnp.float32),
            ),
            grid_spec=pltpu.PrefetchScalarGridSpec(
                num_scalar_prefetch=0,
                grid=(num_splits, steps),
                in_specs=[
                    pl.BlockSpec((1, tm, LANES), lambda c, j: (c, j, 0)),
                    pl.BlockSpec((1, tm, LANES), lambda c, j: (c, j, 0)),
                ],
                out_specs=(
                    # Resident accumulator blocks: same block for every j.
                    pl.BlockSpec((1, SUBLANES, LANES), lambda c, j: (c, 0, 0)),
                    pl.BlockSpec((1, SUBLANES, LANES), lambda c, j: (c, 0, 0)),
                ),
            ),
            compiler_params=pltpu.CompilerParams(
                dimension_semantics=("parallel", "arbitrary"),
            ),
        )(t3d, p3d)

        inter = jnp.sum(inter_out) + tail_inter
        denom = jnp.sum(denom_out) + tail_denom

    dice = (2.0 * inter + SMOOTH) / (denom + SMOOTH)
    return (1.0 - dice).astype(jnp.float32)


def dice_loss_ref(targets, preds):
    t = targets.astype(jnp.float32).reshape(-1)
    p = preds.astype(jnp.float32).reshape(-1)
    inter = jnp.sum(t * p)
    return 1.0 - (2.0 * inter + SMOOTH) / (jnp.sum(t) + jnp.sum(p) + SMOOTH)


if __name__ == "__main__":
    key = jax.random.PRNGKey(0)
    k1, k2 = jax.random.split(key)
    # NCHW inputs, small shapes: batch=2, channels=4, spatial=16x16
    B, C, H, W = 2, 4, 16, 16
    preds = jax.nn.sigmoid(jax.random.normal(k1, (B, C, H, W), jnp.float32))
    targets = (jax.random.uniform(k2, (B, C, H, W)) > 0.5).astype(jnp.float32)

    loss = dice_loss_pallas(targets, preds)
    jax.block_until_ready(loss)

    ref = dice_loss_ref(targets, preds)
    assert jnp.allclose(loss, ref, atol=1e-5, rtol=1e-5), (loss, ref)
    # TODO(synk): the original module detaches to numpy and re-wraps with
    # requires_grad=True (gradients do not actually flow); here we just return
    # the scalar loss value (no custom_vjp defined).
    print("KERNEL_OK")
</pallas_src>

<mosaic_0001>
module attributes {stable_mosaic.version = 11 : i64} {
  func.func @_dice_kernel(%arg0: i32, %arg1: i32, %arg2: memref<1x16x128xf32, #tpu.memory_space<vmem>>, %arg3: memref<1x16x128xf32, #tpu.memory_space<vmem>>, %arg4: memref<1x8x128xf32, #tpu.memory_space<vmem>>, %arg5: memref<1x8x128xf32, #tpu.memory_space<vmem>>) attributes {dimension_semantics = [#tpu.dimension_semantics<parallel>, #tpu.dimension_semantics<arbitrary>], iteration_bounds = array<i64: 1, 1>, scalar_prefetch = 0 : i64, scratch_operands = 0 : i64, tpu.core_type = #tpu.core_type<tc>, window_params = [{transform_indices = @transform_0, window_bounds = array<i64: 1, 16, 128>}, {transform_indices = @transform_1, window_bounds = array<i64: 1, 16, 128>}, {transform_indices = @transform_2, window_bounds = array<i64: 1, 8, 128>}, {transform_indices = @transform_3, window_bounds = array<i64: 1, 8, 128>}]} {
    %c0_i32 = arith.constant 0 : i32
    %0 = arith.cmpi eq, %arg1, %c0_i32 : i32
    %1 = arith.extui %0 : i1 to i32
    %c0_i32_0 = arith.constant 0 : i32
    %2 = arith.cmpi ne, %1, %c0_i32_0 : i32
    scf.if %2 {
      %cst_19 = arith.constant 0.000000e+00 : f32
      %25 = vector.broadcast %cst_19 : f32 to vector<1x8x128xf32>
      %c0_20 = arith.constant 0 : index
      %c0_21 = arith.constant 0 : index
      %c0_22 = arith.constant 0 : index
      %26 = vector.load %arg4[%c0_20, %c0_21, %c0_22] : memref<1x8x128xf32, #tpu.memory_space<vmem>>, vector<1x8x128xf32>
      tpu.vector_store %arg4[%c0_20, %c0_21, %c0_22], %25 {strides = array<i32>} : memref<1x8x128xf32, #tpu.memory_space<vmem>>, vector<1x8x128xf32>,
      %cst_23 = arith.constant 0.000000e+00 : f32
      %27 = vector.broadcast %cst_23 : f32 to vector<1x8x128xf32>
      %c0_24 = arith.constant 0 : index
      %c0_25 = arith.constant 0 : index
      %c0_26 = arith.constant 0 : index
      %28 = vector.load %arg5[%c0_24, %c0_25, %c0_26] : memref<1x8x128xf32, #tpu.memory_space<vmem>>, vector<1x8x128xf32>
      tpu.vector_store %arg5[%c0_24, %c0_25, %c0_26], %27 {strides = array<i32>} : memref<1x8x128xf32, #tpu.memory_space<vmem>>, vector<1x8x128xf32>,
    } else {
    }
    %c0 = arith.constant 0 : index
    %c0_1 = arith.constant 0 : index
    %c0_2 = arith.constant 0 : index
    %3 = vector.load %arg2[%c0, %c0_1, %c0_2] : memref<1x16x128xf32, #tpu.memory_space<vmem>>, vector<1x16x128xf32>
    %4 = vector.shape_cast %3 : vector<1x16x128xf32> to vector<16x128xf32>
    %c0_3 = arith.constant 0 : index
    %c0_4 = arith.constant 0 : index
    %c0_5 = arith.constant 0 : index
    %5 = vector.load %arg3[%c0_3, %c0_4, %c0_5] : memref<1x16x128xf32, #tpu.memory_space<vmem>>, vector<1x16x128xf32>
    %6 = vector.shape_cast %5 : vector<1x16x128xf32> to vector<16x128xf32>
    %7 = arith.mulf %4, %6 : vector<16x128xf32>
    %8 = arith.addf %4, %6 : vector<16x128xf32>
    %c0_6 = arith.constant 0 : index
    %c0_7 = arith.constant 0 : index
    %c0_8 = arith.constant 0 : index
    %9 = vector.load %arg4[%c0_6, %c0_7, %c0_8] : memref<1x8x128xf32, #tpu.memory_space<vmem>>, vector<1x8x128xf32>
    %10 = vector.shape_cast %9 : vector<1x8x128xf32> to vector<8x128xf32>
    %11 = vector.shape_cast %7 : vector<16x128xf32> to vector<2x8x128xf32>
    %cst = arith.constant dense<0.000000e+00> : vector<8x128xf32>
    %12 = vector.multi_reduction <add>, %11, %cst [0] : vector<2x8x128xf32> to vector<8x128xf32>
    %13 = arith.addf %10, %12 : vector<8x128xf32>
    %c0_9 = arith.constant 0 : index
    %c0_10 = arith.constant 0 : index
    %c0_11 = arith.constant 0 : index
    %14 = vector.load %arg4[%c0_9, %c0_10, %c0_11] : memref<1x8x128xf32, #tpu.memory_space<vmem>>, vector<1x8x128xf32>
    %15 = vector.shape_cast %14 : vector<1x8x128xf32> to vector<8x128xf32>
    %16 = vector.shape_cast %13 : vector<8x128xf32> to vector<1x8x128xf32>
    tpu.vector_store %arg4[%c0_9, %c0_10, %c0_11], %16 {strides = array<i32>} : memref<1x8x128xf32, #tpu.memory_space<vmem>>, vector<1x8x128xf32>,
    %c0_12 = arith.constant 0 : index
    %c0_13 = arith.constant 0 : index
    %c0_14 = arith.constant 0 : index
    %17 = vector.load %arg5[%c0_12, %c0_13, %c0_14] : memref<1x8x128xf32, #tpu.memory_space<vmem>>, vector<1x8x128xf32>
    %18 = vector.shape_cast %17 : vector<1x8x128xf32> to vector<8x128xf32>
    %19 = vector.shape_cast %8 : vector<16x128xf32> to vector<2x8x128xf32>
    %cst_15 = arith.constant dense<0.000000e+00> : vector<8x128xf32>
    %20 = vector.multi_reduction <add>, %19, %cst_15 [0] : vector<2x8x128xf32> to vector<8x128xf32>
    %21 = arith.addf %18, %20 : vector<8x128xf32>
    %c0_16 = arith.constant 0 : index
    %c0_17 = arith.constant 0 : index
    %c0_18 = arith.constant 0 : index
    %22 = vector.load %arg5[%c0_16, %c0_17, %c0_18] : memref<1x8x128xf32, #tpu.memory_space<vmem>>, vector<1x8x128xf32>
    %23 = vector.shape_cast %22 : vector<1x8x128xf32> to vector<8x128xf32>
    %24 = vector.shape_cast %21 : vector<8x128xf32> to vector<1x8x128xf32>
    tpu.vector_store %arg5[%c0_16, %c0_17, %c0_18], %24 {strides = array<i32>} : memref<1x8x128xf32, #tpu.memory_space<vmem>>, vector<1x8x128xf32>,
    return
  }
  func.func @transform_0(%arg0: i32, %arg1: i32) -> (i32, i32, i32) {
    %c0_i32 = arith.constant 0 : i32
    %c0_i32_0 = arith.constant 0 : i32
    return %arg0, %arg1, %c0_i32 : i32, i32, i32
  }
  func.func @transform_1(%arg0: i32, %arg1: i32) -> (i32, i32, i32) {
    %c0_i32 = arith.constant 0 : i32
    %c0_i32_0 = arith.constant 0 : i32
    return %arg0, %arg1, %c0_i32 : i32, i32, i32
  }
  func.func @transform_2(%arg0: i32, %arg1: i32) -> (i32, i32, i32) {
    %c0_i32 = arith.constant 0 : i32
    %c0_i32_0 = arith.constant 0 : i32
    %c0_i32_1 = arith.constant 0 : i32
    return %arg0, %c0_i32, %c0_i32_0 : i32, i32, i32
  }
  func.func @transform_3(%arg0: i32, %arg1: i32) -> (i32, i32, i32) {
    %c0_i32 = arith.constant 0 : i32
    %c0_i32_0 = arith.constant 0 : i32
    %c0_i32_1 = arith.constant 0 : i32
    return %arg0, %c0_i32, %c0_i32_0 : i32, i32, i32
  }
}

</mosaic_0001>

<llo_original>
// kernel: tpu_custom_call.1
$region0: #{tpu_custom_call.1}
  #allocation0 [shape = 'u32[]', space=smem, size = 0x4, offset = 0x4, fixed_abs, tag = 'smem constant byte address 0x4 - core index']
  #allocation1 [shape = 'u32[144,128]{1,0:T(1,128)}', space=vmem, size = 0x12000, scoped, tag = 'internal scratch']
  %s0 = inlined_call_operand.hbm [shape: f32[1,16,128], index: 0, kind: input, shape index: {}]
  %s1 = inlined_call_operand.hbm [shape: f32[1,16,128], index: 1, kind: input, shape index: {}]
  %s2 = inlined_call_operand.hbm [shape: f32[1,8,128], index: 2, kind: output, shape index: {0}]
  %s3 = inlined_call_operand.hbm [shape: f32[1,8,128], index: 3, kind: output, shape index: {1}]
  %4 = xla_tuple %s2, %s3
  %s5 = sld [smem:[#allocation0]]
  $region38: #{tpu_custom_call.1} parent=0
    _
  %s7 = ssub.s32 1, %s5
  %s8 = scalar_select 0, %s7, %s5
  $region1: #{tpu_custom_call.1} parent=0
    #allocation2 [shape = 'u8[8192]{0}', space=vmem, size = 0x2000, scoped, tag = 'input window, operand 0, single buffered']
    #allocation3 [shape = 's32[1]{0}', space=sflag, size = 0x4, scoped, tag = 'scoped memory for tpu_custom_call.1']
    #allocation4 [shape = 's32[1]{0}', space=sflag, size = 0x4, scoped, tag = 'scoped memory for tpu_custom_call.1']
    #allocation5 [shape = 'u8[8192]{0}', space=vmem, size = 0x2000, scoped, tag = 'input window, operand 1, single buffered']
    #allocation6 [shape = 's32[1]{0}', space=sflag, size = 0x4, scoped, tag = 'scoped memory for tpu_custom_call.1']
    #allocation7 [shape = 'u8[4096]{0}', space=vmem, size = 0x1000, scoped, tag = 'output window, operand 0, single buffered']
    #allocation8 [shape = 'u8[4096]{0}', space=vmem, size = 0x1000, scoped, tag = 'output window, operand 1, single buffered']
    #allocation9 [shape = 's32[1]{0}', space=sflag, size = 0x4, scoped, tag = 'scoped memory for tpu_custom_call.1']
    %9 = vsyncpa [#allocation3], 0
    %10 = vsyncpa [#allocation6], 0
    %11 = vsyncpa [#allocation4], 0
    %12 = vsyncpa [#allocation9], 0
    // Predicated region
    $region2: #{tpu_custom_call.1} parent=1 // pred_check
      _
    $region3: #{tpu_custom_call.1} parent=1 // pred_check_branch
      %14 = sbr.rel (0) target = $region5
    $region4: #{tpu_custom_call.1} parent=1 // pred_region
      %s16 = ssub.s32 256, 256
      %17 = vsyncadd [#allocation3], %s16
      %s18 = sshll.u32 [#allocation2], 4
      %s19 = int_to_ptr.vmem [resolvable:$true] %s18
      %24 = dma.hbm_to_vmem [thread:$0]  %s0, 256, %s19, [#allocation3], 128, 128, 8
    $region5: #{tpu_custom_call.1} parent=1 // pred_fallthru
      _
    // Predicated region
    $region6: #{tpu_custom_call.1} parent=1 // pred_check
      _
    $region7: #{tpu_custom_call.1} parent=1 // pred_check_branch
      %26 = sbr.rel (0) target = $region9
    $region8: #{tpu_custom_call.1} parent=1 // pred_region
      %s28 = ssub.s32 256, 256
      %29 = vsyncadd [#allocation6], %s28
      %s30 = sshll.u32 [#allocation5], 4
      %s31 = int_to_ptr.vmem [resolvable:$true] %s30
      %36 = dma.hbm_to_vmem [thread:$0]  %s1, 256, %s31, [#allocation6], 128, 128, 8
    $region9: #{tpu_custom_call.1} parent=1 // pred_fallthru
      _
    // Predicated region
    $region10: #{tpu_custom_call.1} parent=1 // pred_check
      _
    $region11: #{tpu_custom_call.1} parent=1 // pred_check_branch
      %38 = sbr.rel (0) target = $region13
    $region12: #{tpu_custom_call.1} parent=1 // pred_region
      %39 = dma.done [#allocation3], 256
    $region13: #{tpu_custom_call.1} parent=1 // pred_fallthru
      _
    // Predicated region
    $region14: #{tpu_custom_call.1} parent=1 // pred_check
      _
    $region15: #{tpu_custom_call.1} parent=1 // pred_check_branch
      %41 = sbr.rel (0) target = $region17
    $region16: #{tpu_custom_call.1} parent=1 // pred_region
      %42 = dma.done [#allocation6], 256
    $region17: #{tpu_custom_call.1} parent=1 // pred_fallthru
      _
    %p43 = scmp.eq.s32.totalorder 0, 0
    // Predicated region
    $region18: #{tpu_custom_call.1} parent=1 // pred_check
      %p44 = pneg %p43
    $region19: #{tpu_custom_call.1} parent=1 // pred_check_branch
      %46 = sbr.rel (%p44) target = $region21
    $region20: #{tpu_custom_call.1} parent=1 // pred_region
      %47 = vst [vmem:[#allocation7] sm:$0xff] 0.0
      %48 = vst [vmem:[#allocation8] sm:$0xff] 0.0
    $region21: #{tpu_custom_call.1} parent=1 // pred_fallthru
      _
    %v49 = vld [vmem:[#allocation2] sm:$0xff]
    %v50 = vld [vmem:[#allocation2 + $0x8] sm:$0xff]
    %v51 = vld [vmem:[#allocation5] sm:$0xff]
    %v52 = vld [vmem:[#allocation5 + $0x8] sm:$0xff]
    %v53 = vmul.f32 %v49, %v51
    %v54 = vmul.f32 %v50, %v52
    %v55 = vadd.f32 %v49, %v51
    %v56 = vadd.f32 %v50, %v52
    %v57 = vld [vmem:[#allocation7] sm:$0xff]
    %v58 = vadd.f32 %v53, %v54
    %v59 = vadd.f32 %v57, %v58
    %60 = vst [vmem:[#allocation7] sm:$0xff] %v59
    %v61 = vld [vmem:[#allocation8] sm:$0xff]
    %v62 = vadd.f32 %v55, %v56
    %v63 = vadd.f32 %v61, %v62
    %64 = vst [vmem:[#allocation8] sm:$0xff] %v63
    // Predicated region
    $region22: #{tpu_custom_call.1} parent=1 // pred_check
      _
    $region23: #{tpu_custom_call.1} parent=1 // pred_check_branch
      %66 = sbr.rel (0) target = $region25
    $region24: #{tpu_custom_call.1} parent=1 // pred_region
      %s68 = ssub.s32 128, 128
      %69 = vsyncadd [#allocation4], %s68
      %s71 = sshll.u32 [#allocation7], 4
      %s72 = int_to_ptr.vmem [resolvable:$true] %s71
      %74 = dma.vmem_to_hbm [thread:$0]  %s72, 128, %s2, [#allocation4]
    $region25: #{tpu_custom_call.1} parent=1 // pred_fallthru
      _
    // Predicated region
    $region26: #{tpu_custom_call.1} parent=1 // pred_check
      _
    $region27: #{tpu_custom_call.1} parent=1 // pred_check_branch
      %76 = sbr.rel (0) target = $region29
    $region28: #{tpu_custom_call.1} parent=1 // pred_region
      %s78 = ssub.s32 128, 128
      %79 = vsyncadd [#allocation9], %s78
      %s81 = sshll.u32 [#allocation8], 4
      %s82 = int_to_ptr.vmem [resolvable:$true] %s81
      %84 = dma.vmem_to_hbm [thread:$0]  %s82, 128, %s3, [#allocation9]
    $region29: #{tpu_custom_call.1} parent=1 // pred_fallthru
      _
    // Predicated region
    $region30: #{tpu_custom_call.1} parent=1 // pred_check
      _
    $region31: #{tpu_custom_call.1} parent=1 // pred_check_branch
      %86 = sbr.rel (0) target = $region33
    $region32: #{tpu_custom_call.1} parent=1 // pred_region
      %87 = dma.done [#allocation4], 128
    $region33: #{tpu_custom_call.1} parent=1 // pred_fallthru
      _
    // Predicated region
    $region34: #{tpu_custom_call.1} parent=1 // pred_check
      _
    $region35: #{tpu_custom_call.1} parent=1 // pred_check_branch
      %89 = sbr.rel (0) target = $region37
    $region36: #{tpu_custom_call.1} parent=1 // pred_region
      %90 = dma.done [#allocation9], 128
    $region37: #{tpu_custom_call.1} parent=1 // pred_fallthru
      _
    %91 = vsyncpa [#allocation3], 1
    %92 = vsyncpa [#allocation6], 1
    %93 = vsyncpa [#allocation4], 1
    %94 = vsyncpa [#allocation9], 1

</llo_original>
